<compile_context>
chip_gen: v7x
topology: tpu7x:2x2x1
jax: 0.10.0
libtpu: 0.0.40
codegen_flags: <defaults>
</compile_context>

<pallas_src>
import jax
import jax.numpy as jnp
from jax.experimental import pallas as pl
from jax.experimental.pallas import tpu as pltpu

HIDDEN = 20
IN_FEATURES = 2


def mlp_kernel(x_ref, w1_ref, b1_ref, w2_ref, b2_ref, o_ref):
    # x_ref : [2, TILE_B]  (features on sublanes, batch on lanes; compute dtype)
    # w1_ref: [20, 2]  b1_ref: [20, 1]  w2_ref: [20, 1]   (compute dtype, resident)
    # b2_ref: [1, 1] f32                o_ref : [1, TILE_B] f32
    x = x_ref[...]
    w1 = w1_ref[...]
    # TODO(synk): when stride-0 slices are supported by the installed runtime,
    # x_ref[pl.ds(0, HIDDEN, stride=0), :] would feed these sublane broadcasts
    # through the (idle) load slot instead of the VALU.
    x0 = x[0:1, :]                                         # [1, TB]
    x1 = x[1:2, :]                                         # [1, TB]

    # Layer 1 (K=2): two broadcast FMAs on the VPU (bf16-packed on v6e/v7x).
    h = w1[:, 0:1] * x0 + w1[:, 1:2] * x1 + b1_ref[...]    # [20, TB]
    h = jnp.maximum(h, 0.0)                                # ReLU (VPU)

    # Layer 2 (K=20): elementwise multiply in compute dtype, then f32 sublane
    # reduce (XLU); bias add + sigmoid (EUP) in f32.
    hw = (h * w2_ref[...]).astype(jnp.float32)             # [20, TB]
    y = jnp.sum(hw, axis=0, keepdims=True) + b2_ref[...]   # [1, TB] f32
    o_ref[...] = jax.nn.sigmoid(y)


def _cdiv(a, b):
    return -(-a // b)


def _round_up(n, m):
    return ((n + m - 1) // m) * m


def _default_compute_dtype():
    # bf16 VALU exists on v6e/v7x; v5e (and older) VPUs are f32-only.
    try:
        kind = jax.devices()[0].device_kind.lower()
    except Exception:
        return jnp.float32
    if "v6" in kind or "v7" in kind:
        return jnp.bfloat16
    return jnp.float32


def circle_classifier_forward(x, w1, b1, w2, b2, *, tile_b=None,
                              compute_dtype=None, feature_major=False):
    """Forward pass matching the PyTorch module.

    x : [B, 2] f32  (or [2, B] if feature_major=True -- skips the transpose copy)
    w1: [20, 2]  b1: [20]   (nn.Linear(2, 20) convention)
    w2: [1, 20]  b2: [1]    (nn.Linear(20, 1) convention)
    Returns [B, 1] f32.
    """
    if compute_dtype is None:
        compute_dtype = _default_compute_dtype()

    if feature_major:
        in_f, B = x.shape
        x_t = x.astype(compute_dtype)                # already [2, B]: no copy needed
    else:
        B, in_f = x.shape
        x_t = x.T.astype(compute_dtype)              # single fused transpose + cast
    hid = w1.shape[0]
    assert in_f == w1.shape[1] == IN_FEATURES

    w1_c = w1.astype(compute_dtype)                  # [20, 2]
    b1_c = b1.reshape(hid, 1).astype(compute_dtype)  # [20, 1]
    w2_c = w2.reshape(hid, 1).astype(compute_dtype)  # [20, 1]
    b2_c = b2.reshape(1, 1).astype(jnp.float32)      # [1, 1]  (f32 tail)

    if tile_b is None:
        # Lane-dense tiles as large as useful (amortize ~0.35us/step), but keep
        # >= 2 grid steps when B > 128 so v7x's two TensorCores both get work.
        # At the 32768 cap, double-buffered x/out tiles + the [20, tile_b]
        # intermediate are < 4 MiB -- inside every generation's scoped-VMEM
        # default (16 MiB v5e, 32 MiB v6e/v7x), so no vmem_limit_bytes needed.
        tile_b = max(128, min(32768, _round_up(_cdiv(B, 2), 128)))
    else:
        tile_b = _round_up(int(tile_b), 128)

    grid = (_cdiv(B, tile_b),)

    param_bytes = sum(int(a.size) * a.dtype.itemsize
                      for a in (w1_c, b1_c, w2_c, b2_c))
    cost = pl.CostEstimate(
        flops=int(B * (2 * in_f * hid + 2 * hid)),
        transcendentals=int(B),
        bytes_accessed=int(B * in_f * x_t.dtype.itemsize   # x read
                           + B * 4                          # y written (f32)
                           + param_bytes),                   # resident params
    )

    y_t = pl.pallas_call(
        mlp_kernel,
        out_shape=jax.ShapeDtypeStruct((1, B), jnp.float32),
        grid=grid,
        in_specs=[
            pl.BlockSpec((in_f, tile_b), lambda i: (0, i)),  # x tile (pipelined)
            pl.BlockSpec((hid, in_f), lambda i: (0, 0)),     # w1 resident
            pl.BlockSpec((hid, 1), lambda i: (0, 0)),        # b1 resident
            pl.BlockSpec((hid, 1), lambda i: (0, 0)),        # w2 resident
            pl.BlockSpec((1, 1), lambda i: (0, 0)),          # b2 resident
        ],
        out_specs=pl.BlockSpec((1, tile_b), lambda i: (0, i)),
        compiler_params=pltpu.CompilerParams(
            dimension_semantics=("parallel",),               # shards steps across v7x TCs
        ),
        cost_estimate=cost,
    )(x_t, w1_c, b1_c, w2_c, b2_c)

    return y_t.T                                             # [B, 1] (free: degenerate dim)


def init_params(key):
    """Deterministic init mimicking nn.Linear defaults (PyTorch layout)."""
    k1, k2, k3, k4 = jax.random.split(key, 4)
    bound1 = 1.0 / jnp.sqrt(float(IN_FEATURES))   # layer1 fan_in = 2
    bound2 = 1.0 / jnp.sqrt(float(HIDDEN))        # layer2 fan_in = 20
    w1 = jax.random.uniform(k1, (HIDDEN, IN_FEATURES), jnp.float32, -bound1, bound1)
    b1 = jax.random.uniform(k2, (HIDDEN,), jnp.float32, -bound1, bound1)
    w2 = jax.random.uniform(k3, (1, HIDDEN), jnp.float32, -bound2, bound2)
    b2 = jax.random.uniform(k4, (1,), jnp.float32, -bound2, bound2)
    return w1, b1, w2, b2


def _reference(x, w1, b1, w2, b2):
    h = jnp.maximum(x @ w1.T + b1, 0.0)
    return jax.nn.sigmoid(h @ w2.T + b2)


if __name__ == "__main__":
    key = jax.random.PRNGKey(0)
    kx1, kx2, kp = jax.random.split(key, 3)
    w1, b1, w2, b2 = init_params(kp)

    bf16_active = _default_compute_dtype() == jnp.bfloat16
    atol = 2e-2 if bf16_active else 1e-5

    # Case 1: tiny batch (single ragged tile, no padding copy anywhere).
    x_small = jax.random.normal(kx1, (8, IN_FEATURES), jnp.float32)
    out_small = jax.block_until_ready(
        circle_classifier_forward(x_small, w1, b1, w2, b2))
    ref_small = _reference(x_small, w1, b1, w2, b2)
    assert out_small.shape == (8, 1)
    assert jnp.allclose(out_small, ref_small, atol=atol, rtol=atol)

    # Case 2: non-multiple-of-tile batch with an explicit multi-step grid
    # (exercises boundary masking of the ragged last tile, pipelining, and
    # resident weights).
    x_big = jax.random.normal(kx2, (300, IN_FEATURES), jnp.float32)
    out_big = jax.block_until_ready(
        circle_classifier_forward(x_big, w1, b1, w2, b2, tile_b=128))
    ref_big = _reference(x_big, w1, b1, w2, b2)
    assert out_big.shape == (300, 1)
    assert jnp.allclose(out_big, ref_big, atol=atol, rtol=atol)

    # Case 3: caller supplies x already feature-major ([2, B]) -> no x.T copy.
    out_fm = jax.block_until_ready(
        circle_classifier_forward(x_big.T, w1, b1, w2, b2, feature_major=True))
    assert out_fm.shape == (300, 1)
    assert jnp.allclose(out_fm, ref_big, atol=atol, rtol=atol)

    # Forced-f32 path must hold tight tolerance on every generation (v5e path).
    out_f32 = jax.block_until_ready(
        circle_classifier_forward(x_big, w1, b1, w2, b2,
                                  compute_dtype=jnp.float32))
    assert jnp.allclose(out_f32, ref_big, atol=1e-5, rtol=1e-5)

    print("KERNEL_OK")
</pallas_src>

<mosaic_0001>
module attributes {stable_mosaic.version = 11 : i64} {
  func.func @mlp_kernel(%arg0: i32, %arg1: memref<2x128xf32, #tpu.memory_space<vmem>>, %arg2: memref<20x2xf32, #tpu.memory_space<vmem>>, %arg3: memref<20x1xf32, #tpu.memory_space<vmem>>, %arg4: memref<20x1xf32, #tpu.memory_space<vmem>>, %arg5: memref<1x1xf32, #tpu.memory_space<vmem>>, %arg6: memref<1x128xf32, #tpu.memory_space<vmem>>) attributes {dimension_semantics = [#tpu.dimension_semantics<parallel>], iteration_bounds = array<i64: 1>, scalar_prefetch = 0 : i64, scratch_operands = 0 : i64, tpu.core_type = #tpu.core_type<tc>, window_params = [{transform_indices = @transform_0, window_bounds = array<i64: 2, 128>}, {pipeline_mode = #tpu.pipeline_mode<synchronous>, transform_indices = @transform_1, window_bounds = array<i64: 20, 2>}, {pipeline_mode = #tpu.pipeline_mode<synchronous>, transform_indices = @transform_2, window_bounds = array<i64: 20, 1>}, {pipeline_mode = #tpu.pipeline_mode<synchronous>, transform_indices = @transform_3, window_bounds = array<i64: 20, 1>}, {pipeline_mode = #tpu.pipeline_mode<synchronous>, transform_indices = @transform_4, window_bounds = array<i64: 1, 1>}, {transform_indices = @transform_5, window_bounds = array<i64: 1, 128>}]} {
    %c0 = arith.constant 0 : index
    %c0_0 = arith.constant 0 : index
    %0 = vector.load %arg1[%c0, %c0_0] : memref<2x128xf32, #tpu.memory_space<vmem>>, vector<2x128xf32>
    %c0_1 = arith.constant 0 : index
    %c0_2 = arith.constant 0 : index
    %1 = vector.load %arg2[%c0_1, %c0_2] : memref<20x2xf32, #tpu.memory_space<vmem>>, vector<20x2xf32>
    %2 = vector.extract_strided_slice %0 {offsets = [0, 0], sizes = [1, 128], strides = [1, 1]} : vector<2x128xf32> to vector<1x128xf32>
    %3 = vector.extract_strided_slice %0 {offsets = [1, 0], sizes = [1, 128], strides = [1, 1]} : vector<2x128xf32> to vector<1x128xf32>
    %4 = vector.extract_strided_slice %1 {offsets = [0, 0], sizes = [20, 1], strides = [1, 1]} : vector<20x2xf32> to vector<20x1xf32>
    %5 = vector.broadcast %4 : vector<20x1xf32> to vector<20x128xf32>
    %6 = vector.broadcast %2 : vector<1x128xf32> to vector<20x128xf32>
    %7 = arith.mulf %5, %6 : vector<20x128xf32>
    %8 = vector.extract_strided_slice %1 {offsets = [0, 1], sizes = [20, 1], strides = [1, 1]} : vector<20x2xf32> to vector<20x1xf32>
    %9 = vector.broadcast %8 : vector<20x1xf32> to vector<20x128xf32>
    %10 = vector.broadcast %3 : vector<1x128xf32> to vector<20x128xf32>
    %11 = arith.mulf %9, %10 : vector<20x128xf32>
    %12 = arith.addf %7, %11 : vector<20x128xf32>
    %c0_3 = arith.constant 0 : index
    %c0_4 = arith.constant 0 : index
    %13 = vector.load %arg3[%c0_3, %c0_4] : memref<20x1xf32, #tpu.memory_space<vmem>>, vector<20x1xf32>
    %14 = vector.broadcast %13 : vector<20x1xf32> to vector<20x128xf32>
    %15 = arith.addf %12, %14 : vector<20x128xf32>
    %cst = arith.constant 0.000000e+00 : f32
    %16 = vector.broadcast %cst : f32 to vector<20x128xf32>
    %17 = arith.maximumf %15, %16 : vector<20x128xf32>
    %c0_5 = arith.constant 0 : index
    %c0_6 = arith.constant 0 : index
    %18 = vector.load %arg4[%c0_5, %c0_6] : memref<20x1xf32, #tpu.memory_space<vmem>>, vector<20x1xf32>
    %19 = vector.broadcast %18 : vector<20x1xf32> to vector<20x128xf32>
    %20 = arith.mulf %17, %19 : vector<20x128xf32>
    %cst_7 = arith.constant dense<0.000000e+00> : vector<128xf32>
    %21 = vector.multi_reduction <add>, %20, %cst_7 [0] : vector<20x128xf32> to vector<128xf32>
    %22 = vector.shape_cast %21 : vector<128xf32> to vector<1x128xf32>
    %c0_8 = arith.constant 0 : index
    %c0_9 = arith.constant 0 : index
    %23 = vector.load %arg5[%c0_8, %c0_9] : memref<1x1xf32, #tpu.memory_space<vmem>>, vector<1x1xf32>
    %24 = vector.broadcast %23 : vector<1x1xf32> to vector<1x128xf32>
    %25 = arith.addf %22, %24 : vector<1x128xf32>
    %26 = arith.negf %25 : vector<1x128xf32>
    %27 = math.exp %26 : vector<1x128xf32>
    %cst_10 = arith.constant 1.000000e+00 : f32
    %28 = vector.broadcast %cst_10 : f32 to vector<1x128xf32>
    %29 = arith.addf %28, %27 : vector<1x128xf32>
    %30 = arith.divf %28, %29 : vector<1x128xf32>
    %c0_11 = arith.constant 0 : index
    %c0_12 = arith.constant 0 : index
    %31 = vector.load %arg6[%c0_11, %c0_12] : memref<1x128xf32, #tpu.memory_space<vmem>>, vector<1x128xf32>
    tpu.vector_store %arg6[%c0_11, %c0_12], %30 {strides = array<i32>} : memref<1x128xf32, #tpu.memory_space<vmem>>, vector<1x128xf32>,
    return
  }
  func.func @transform_0(%arg0: i32) -> (i32, i32) {
    %c0_i32 = arith.constant 0 : i32
    %c0_i32_0 = arith.constant 0 : i32
    return %c0_i32, %arg0 : i32, i32
  }
  func.func @transform_1(%arg0: i32) -> (i32, i32) {
    %c0_i32 = arith.constant 0 : i32
    %c0_i32_0 = arith.constant 0 : i32
    %c0_i32_1 = arith.constant 0 : i32
    return %c0_i32, %c0_i32_0 : i32, i32
  }
  func.func @transform_2(%arg0: i32) -> (i32, i32) {
    %c0_i32 = arith.constant 0 : i32
    %c0_i32_0 = arith.constant 0 : i32
    %c0_i32_1 = arith.constant 0 : i32
    return %c0_i32, %c0_i32_0 : i32, i32
  }
  func.func @transform_3(%arg0: i32) -> (i32, i32) {
    %c0_i32 = arith.constant 0 : i32
    %c0_i32_0 = arith.constant 0 : i32
    %c0_i32_1 = arith.constant 0 : i32
    return %c0_i32, %c0_i32_0 : i32, i32
  }
  func.func @transform_4(%arg0: i32) -> (i32, i32) {
    %c0_i32 = arith.constant 0 : i32
    %c0_i32_0 = arith.constant 0 : i32
    %c0_i32_1 = arith.constant 0 : i32
    return %c0_i32, %c0_i32_0 : i32, i32
  }
  func.func @transform_5(%arg0: i32) -> (i32, i32) {
    %c0_i32 = arith.constant 0 : i32
    %c0_i32_0 = arith.constant 0 : i32
    return %c0_i32, %arg0 : i32, i32
  }
}

</mosaic_0001>

<llo_original>
// kernel: tpu_custom_call.1
$region0: #{tpu_custom_call.1}
  #allocation0 [shape = 'u32[]', space=smem, size = 0x4, offset = 0x4, fixed_abs, tag = 'smem constant byte address 0x4 - core index']
  #allocation1 [shape = 'u32[144,128]{1,0:T(1,128)}', space=vmem, size = 0x12000, scoped, tag = 'internal scratch']
  #allocation2 [shape = 'f32[1,1]{1,0:T(1,128)S(1)}', space=vmem, size = 0x200, scoped, tag = 'scoped memory for tpu_custom_call.1']
  %s0 = inlined_call_operand.vmem [shape: f32[2,8], index: 0, kind: input, shape index: {}]
  %s1 = inlined_call_operand.vmem [shape: f32[20,2], index: 1, kind: input, shape index: {}]
  %s2 = inlined_call_operand.vmem [shape: f32[20,1], index: 2, kind: input, shape index: {}]
  %s3 = inlined_call_operand.vmem [shape: f32[20,1], index: 3, kind: input, shape index: {}]
  %s4 = inlined_call_operand.<no memory space> [shape: f32[1,1], index: 4, kind: input, shape index: {}]
  %s5 = inlined_call_operand.hbm [shape: f32[1,8], index: 5, kind: output, shape index: {}]
  %s6 = sld [smem:[#allocation0]]
  $region30: #{tpu_custom_call.1} parent=0
    _
  %s8 = ssub.s32 1, %s6
  %s9 = scalar_select 0, %s8, %s6
  %v10 = vstv %s4
  %11 = vst [vmem:[#allocation2] sm:$0x1] %v10
  $region1: #{tpu_custom_call.1} parent=0
    #allocation3 [shape = 'u8[512]{0}', space=vmem, size = 0x400, scoped, tag = 'output window, operand 0, single buffered']
    #allocation4 [shape = 's32[1]{0}', space=sflag, size = 0x4, scoped, tag = 'scoped memory for tpu_custom_call.1']
    %12 = vsyncpa [#allocation4], 0
    // Predicated region
    $region2: #{tpu_custom_call.1} parent=1 // pred_check
      _
    $region3: #{tpu_custom_call.1} parent=1 // pred_check_branch
      %14 = sbr.rel (0) target = $region5
    $region4: #{tpu_custom_call.1} parent=1 // pred_region
      _
    $region5: #{tpu_custom_call.1} parent=1 // pred_fallthru
      _
    // Predicated region
    $region6: #{tpu_custom_call.1} parent=1 // pred_check
      _
    $region7: #{tpu_custom_call.1} parent=1 // pred_check_branch
      %16 = sbr.rel (0) target = $region9
    $region8: #{tpu_custom_call.1} parent=1 // pred_region
      _
    $region9: #{tpu_custom_call.1} parent=1 // pred_fallthru
      _
    // Predicated region
    $region10: #{tpu_custom_call.1} parent=1 // pred_check
      _
    $region11: #{tpu_custom_call.1} parent=1 // pred_check_branch
      %18 = sbr.rel (0) target = $region13
    $region12: #{tpu_custom_call.1} parent=1 // pred_region
      _
    $region13: #{tpu_custom_call.1} parent=1 // pred_fallthru
      _
    // Predicated region
    $region14: #{tpu_custom_call.1} parent=1 // pred_check
      _
    $region15: #{tpu_custom_call.1} parent=1 // pred_check_branch
      %20 = sbr.rel (0) target = $region17
    $region16: #{tpu_custom_call.1} parent=1 // pred_region
      _
    $region17: #{tpu_custom_call.1} parent=1 // pred_fallthru
      _
    // Predicated region
    $region18: #{tpu_custom_call.1} parent=1 // pred_check
      _
    $region19: #{tpu_custom_call.1} parent=1 // pred_check_branch
      %22 = sbr.rel (0) target = $region21
    $region20: #{tpu_custom_call.1} parent=1 // pred_region
      _
    $region21: #{tpu_custom_call.1} parent=1 // pred_fallthru
      _
    %v23 = vld [vmem:[%s0] sm:$0x3]
    %v24 = vld [vmem:[%s1] sm:$0xff]
    %v25 = vld [vmem:[%s1 + $0x8] sm:$0xff]
    %v26 = vld [vmem:[%s1 + $0x10] sm:$0xf]
    %28 = vset.pattern.permute.xlu0 0
    %29 = vperm.xlu0 %28, %v24
    %v30 = vpop.permute.xlu0 %29
    %33 = vset.pattern.permute.xlu0 0
    %34 = vperm.xlu0 %33, %v25
    %v35 = vpop.permute.xlu0 %34
    %38 = vset.pattern.permute.xlu0 0
    %39 = vperm.xlu0 %38, %v26
    %v40 = vpop.permute.xlu0 %39
    %v42 = vlaneseq
    %v43 = vshrl.u32 %v42, 7
    %v44 = vsub.s32 0, %v43
    %v45 = vrot.slane %v23, %v44
    %v46 = vmul.f32 %v30, %v45
    %v47 = vmul.f32 %v35, %v45
    %v48 = vmul.f32 %v40, %v45
    %49 = vset.pattern.permute.xlu0 1
    %50 = vperm.xlu0 %49, %v24
    %v51 = vpop.permute.xlu0 %50
    %53 = vset.pattern.permute.xlu0 1
    %54 = vperm.xlu0 %53, %v25
    %v55 = vpop.permute.xlu0 %54
    %57 = vset.pattern.permute.xlu0 1
    %58 = vperm.xlu0 %57, %v26
    %v59 = vpop.permute.xlu0 %58
    %v61 = vlaneseq
    %v62 = vshrl.u32 %v61, 7
    %v63 = vsub.s32 1, %v62
    %v64 = vrot.slane %v23, %v63
    %v65 = vmul.f32 %v51, %v64
    %v66 = vmul.f32 %v55, %v64
    %v67 = vmul.f32 %v59, %v64
    %v68 = vadd.f32 %v46, %v65
    %v69 = vadd.f32 %v47, %v66
    %v70 = vadd.f32 %v48, %v67
    %v71 = vld [vmem:[%s2] sm:$0xff]
    %v72 = vld [vmem:[%s2 + $0x8] sm:$0xff]
    %v73 = vld [vmem:[%s2 + $0x10] sm:$0xf]
    %75 = vset.pattern.permute.xlu0 0
    %76 = vperm.xlu0 %75, %v71
    %v77 = vpop.permute.xlu0 %76
    %80 = vset.pattern.permute.xlu0 0
    %81 = vperm.xlu0 %80, %v72
    %v82 = vpop.permute.xlu0 %81
    %85 = vset.pattern.permute.xlu0 0
    %86 = vperm.xlu0 %85, %v73
    %v87 = vpop.permute.xlu0 %86
    %v89 = vadd.f32 %v68, %v77
    %v90 = vadd.f32 %v69, %v82
    %v91 = vadd.f32 %v70, %v87
    %v92 = vmax.f32 %v89, 0.0
    %v93 = vmax.f32 %v90, 0.0
    %v94 = vmax.f32 %v91, 0.0
    %v95 = vld [vmem:[%s3] sm:$0xff]
    %v96 = vld [vmem:[%s3 + $0x8] sm:$0xff]
    %v97 = vld [vmem:[%s3 + $0x10] sm:$0xf]
    %99 = vset.pattern.permute.xlu0 0
    %100 = vperm.xlu0 %99, %v95
    %v101 = vpop.permute.xlu0 %100
    %104 = vset.pattern.permute.xlu0 0
    %105 = vperm.xlu0 %104, %v96
    %v106 = vpop.permute.xlu0 %105
    %109 = vset.pattern.permute.xlu0 0
    %110 = vperm.xlu0 %109, %v97
    %v111 = vpop.permute.xlu0 %110
    %v113 = vmul.f32 %v92, %v101
    %v114 = vmul.f32 %v93, %v106
    %v115 = vmul.f32 %v94, %v111
    %v116 = vadd.f32 %v113, %v114
    %vm117 = vcmask 1043456
    %v118 = vsel %vm117, %v115, 0.0
    %v119 = vadd.f32 %v116, %v118
    %v120 = vrot.slane %v119, 4
    %v121 = vadd.f32 %v119, %v120
    %v122 = vrot.slane %v121, 2
    %v123 = vadd.f32 %v121, %v122
    %v124 = vrot.slane %v123, 1
    %v125 = vadd.f32 %v123, %v124
    %v126 = vld [vmem:[#allocation2] sm:$0x1]
    %128 = vset.pattern.permute.xlu0 0
    %129 = vperm.xlu0 %128, %v126
    %v130 = vpop.permute.xlu0 %129
    %v132 = vlaneseq
    %v133 = vshrl.u32 %v132, 7
    %v134 = vsub.s32 0, %v133
    %v135 = vrot.slane %v130, %v134
    %v136 = vadd.f32 %v125, %v135
    %v137 = vxor.u32 %v136, 2147483648
    %v138 = vmul.f32 %v137, 1.442695
    %v139 = vpow.pop %v138
    %v140 = vadd.f32 %v139, 1.0
    %v141 = vrcp.pop %v140
    %v142 = vmul.f32 1.0, %v141
    %143 = vst [vmem:[#allocation3] sm:$0x1] %v142
    // Predicated region
    $region22: #{tpu_custom_call.1} parent=1 // pred_check
      _
    $region23: #{tpu_custom_call.1} parent=1 // pred_check_branch
      %145 = sbr.rel (0) target = $region25
    $region24: #{tpu_custom_call.1} parent=1 // pred_region
      %s147 = ssub.s32 16, 16
      %148 = vsyncadd [#allocation4], %s147
      %s150 = sshll.u32 [#allocation3], 4
      %s151 = int_to_ptr.vmem [resolvable:$true] %s150
      %153 = dma.vmem_to_hbm [thread:$0]  %s151, 16, %s5, [#allocation4]
    $region25: #{tpu_custom_call.1} parent=1 // pred_fallthru
      _
    // Predicated region
    $region26: #{tpu_custom_call.1} parent=1 // pred_check
      _
    $region27: #{tpu_custom_call.1} parent=1 // pred_check_branch
      %155 = sbr.rel (0) target = $region29
    $region28: #{tpu_custom_call.1} parent=1 // pred_region
      %156 = dma.done [#allocation4], 16
    $region29: #{tpu_custom_call.1} parent=1 // pred_fallthru
      _
    %157 = vsyncpa [#allocation4], 1

</llo_original>
